<compile_context>
chip_gen: v6e
topology: v6e:2x2x1
jax: 0.10.0
libtpu: 0.0.40
codegen_flags: <defaults>
</compile_context>

<pallas_src>
import numpy as np
import jax
import jax.numpy as jnp
from jax.experimental import pallas as pl
from jax.experimental.pallas import tpu as pltpu

_LANE = 128
_MIN_GRID_BLOCKS = 4            # >= 2 TensorCores (v7x) x 2 so the parallel axis shards.
_TILE_BUDGET_BYTES = 2 << 20    # per-buffer tile; x2 operands x2 pipeline bufs ~ 8 MiB resident
_VMEM_LIMIT_BYTES = 24 << 20    # explicit scoped limit; safe on v5e/v6e/v7x
_SMALL_BYTES = 256 << 10        # below this: single untiled block (no pipeline overhead)


def _copy_kernel(x_ref, o_ref):
    # Base-model forward carries inputs unchanged: whole-tile VMEM pass-through.
    o_ref[...] = x_ref[...]


def _sublane(dtype) -> int:
    """Sublane packing factor: 8 for 32-bit, 16 for 16-bit, 32 for 8-bit dtypes."""
    return max(8, 32 // jnp.dtype(dtype).itemsize)


def _plan_tiled(total: int, dtype):
    """Pick (lanes, rows, tile_rows) for a lane-dense 2-D slab with NO padding.

    Requires total % 128 == 0. lanes divides total exactly; rows = total//lanes.
    tile_rows is a multiple of the dtype sublane factor, sized to the VMEM tile
    budget and capped so the 1-D grid has at least _MIN_GRID_BLOCKS blocks
    (partial final block is fine: the block stays sublane/lane aligned).
    """
    itemsize = jnp.dtype(dtype).itemsize
    sub = _sublane(dtype)

    lanes = _LANE
    for cand in (2048, 1024, 512, 256, 128):
        if total % cand == 0 and total // cand >= sub * _MIN_GRID_BLOCKS:
            lanes = cand
            break
    rows = total // lanes

    row_bytes = lanes * itemsize
    by_budget = max(sub, (_TILE_BUDGET_BYTES // row_bytes) // sub * sub)
    by_split = max(sub, (rows // _MIN_GRID_BLOCKS) // sub * sub)
    tile_rows = min(by_budget, by_split)
    tile_rows = max(sub, min(tile_rows, -(-rows // sub) * sub))
    return lanes, rows, tile_rows


def _copy_tiled(x2d, tile_rows: int, alias: bool):
    rows, lanes = x2d.shape
    nblocks = -(-rows // tile_rows)
    itemsize = jnp.dtype(x2d.dtype).itemsize
    kwargs = dict(
        out_shape=jax.ShapeDtypeStruct((rows, lanes), x2d.dtype),
        grid=(nblocks,),
        in_specs=[pl.BlockSpec((tile_rows, lanes), lambda i: (i, 0))],
        out_specs=pl.BlockSpec((tile_rows, lanes), lambda i: (i, 0)),
        compiler_params=pltpu.CompilerParams(
            # 1-D parallel grid: lets v7x shard row tiles across its 2 TCs;
            # a no-op on single-TC v5e/v6e.
            dimension_semantics=("parallel",),
            vmem_limit_bytes=_VMEM_LIMIT_BYTES,
        ),
        cost_estimate=pl.CostEstimate(
            flops=0, transcendentals=0,
            bytes_accessed=2 * rows * lanes * itemsize),
    )
    if alias:
        # Only alias when the caller donates the input; otherwise XLA inserts
        # a defensive copy of the operand to satisfy the alias.
        kwargs["input_output_aliases"] = {0: 0}
    return pl.pallas_call(_copy_kernel, **kwargs)(x2d)


def _copy_small(x, alias: bool):
    """Single untiled block: no grid, no pipeline — for tiny tensors."""
    x2 = x.reshape(-1, x.shape[-1]) if x.ndim >= 2 else x.reshape(1, -1)
    itemsize = jnp.dtype(x2.dtype).itemsize
    kwargs = dict(
        out_shape=jax.ShapeDtypeStruct(x2.shape, x2.dtype),
        cost_estimate=pl.CostEstimate(
            flops=0, transcendentals=0,
            bytes_accessed=2 * int(np.prod(x2.shape)) * itemsize),
    )
    if alias:
        kwargs["input_output_aliases"] = {0: 0}
    out = pl.pallas_call(_copy_kernel, **kwargs)(x2)
    return out.reshape(x.shape)


def pallas_forward_passthrough(x: jax.Array, materialize: bool = True,
                               donate_input: bool = False) -> jax.Array:
    """Identity over an arbitrary-shape tensor.

    materialize=False: true zero-cost identity (no kernel launched).
    materialize=True : Pallas copy template (the shape of any subclass hot
                       path): lane-dense (rows, k*128) slab, VMEM-budgeted row
                       tiles, 1-D parallel grid, no pad/slice round-trips.
    donate_input     : set True only when the caller donates x (e.g. via
                       jax.jit(..., donate_argnums=...)); enables in-place
                       output aliasing onto the input HBM buffer.
    """
    if not materialize:
        return x

    total = int(np.prod(x.shape))
    itemsize = jnp.dtype(x.dtype).itemsize
    if total == 0:
        return x

    if total * itemsize <= _SMALL_BYTES:
        return _copy_small(x, alias=donate_input)

    flat = x.reshape(-1)
    if total % _LANE == 0:
        lanes, rows, tile_rows = _plan_tiled(total, x.dtype)
        out = _copy_tiled(flat.reshape(rows, lanes), tile_rows, alias=donate_input)
        return out.reshape(x.shape)

    # Non-128-divisible total: tiled kernel over the 128-aligned prefix, tiny
    # single-block kernel over the (<128 element) tail. Only the final
    # concatenate touches the data again (vs. 2 extra full passes for padding).
    main = (total // _LANE) * _LANE
    lanes, rows, tile_rows = _plan_tiled(main, x.dtype)
    head = _copy_tiled(flat[:main].reshape(rows, lanes), tile_rows, alias=False)
    tail = _copy_small(flat[main:], alias=False)
    return jnp.concatenate([head.reshape(-1), tail]).reshape(x.shape)


class BaseModelJAX:
    """JAX/Pallas mirror of the PyTorch BaseModel skeleton.

    Only the attributes that affect forward() semantics are reproduced; the
    training-loop machinery (fit / mini_batch_loop / print_progress) is host
    Python orchestration with no kernel equivalent.
    """

    def __init__(self):
        self.init = True
        self.optimizer_alg = None
        self.epoch = 0
        self.t_train = 0
        self.t_val = 0
        self.dropout = 0
        self.final_dropout = 0
        self.ann_rate = 0
        self.best_loss_tr = np.inf
        self.best_loss_val = np.inf
        self.best_state = None
        self.best_opt = None
        self.train_functions = [{'name': 'train', 'weight': 1, 'f': None}]
        self.val_functions = [{'name': 'val', 'weight': 1, 'f': None}]
        self.acc_functions = {}
        self.acc = None

    def forward(self, *inputs):
        # Exact semantics of the reference module: no compute, returns None.
        # Subclasses build their hot path on pallas_forward_passthrough-style
        # kernels (lane-dense tiles, 1-D parallel grid).
        return None

    def __call__(self, *inputs):
        return self.forward(*inputs)

    def dropout_update(self):
        if self.final_dropout <= self.dropout:
            self.dropout = max(self.final_dropout, self.dropout - self.ann_rate)


if __name__ == "__main__":
    key = jax.random.PRNGKey(0)
    k1, k2, k3, k4 = jax.random.split(key, 4)

    model = BaseModelJAX()

    # Small NCHW input consistent with the (image-oriented) framework.
    x_small = jax.random.normal(k1, (2, 4, 16, 16), dtype=jnp.float32)

    # 1) Exact forward semantics check: base forward returns None.
    assert model(x_small) is None

    # 2) Zero-cost identity path (recommended default): no kernel at all.
    assert pallas_forward_passthrough(x_small, materialize=False) is x_small

    run = jax.jit(lambda a: pallas_forward_passthrough(a, materialize=True))

    # 3) Small-input fast path: single untiled block.
    y_small = jax.block_until_ready(run(x_small))
    np.testing.assert_array_equal(np.asarray(y_small), np.asarray(x_small))

    # 4) Tiled lane-dense path, f32 (sublane 8): 512 KiB, grid >= 4 blocks.
    x_f32 = jax.random.normal(k2, (4, 8, 32, 128), dtype=jnp.float32)
    y_f32 = jax.block_until_ready(run(x_f32))
    np.testing.assert_array_equal(np.asarray(y_f32), np.asarray(x_f32))

    # 5) Tiled path, bf16 (dtype-aware sublane 16).
    x_bf16 = jax.random.normal(k3, (8, 8, 32, 128), dtype=jnp.bfloat16)
    y_bf16 = jax.block_until_ready(run(x_bf16))
    np.testing.assert_array_equal(
        np.asarray(y_bf16.astype(jnp.float32)),
        np.asarray(x_bf16.astype(jnp.float32)))

    # 6) Non-128-divisible total: 128-aligned prefix (tiled) + tail (tiny block),
    #    no whole-array padding.
    x_odd = jax.random.normal(k4, (131172,), dtype=jnp.float32)
    y_odd = jax.block_until_ready(run(x_odd))
    np.testing.assert_array_equal(np.asarray(y_odd), np.asarray(x_odd))

    # 7) Donated path: input_output_aliases writes the identity in place.
    x_don = jnp.array(np.asarray(x_f32))          # fresh buffer to donate
    ref_don = np.asarray(x_don)
    run_donated = jax.jit(
        lambda a: pallas_forward_passthrough(a, materialize=True, donate_input=True),
        donate_argnums=0)
    y_don = jax.block_until_ready(run_donated(x_don))
    np.testing.assert_array_equal(np.asarray(y_don), ref_don)

    print("KERNEL_OK")
</pallas_src>

<mosaic_0001>
module attributes {stable_mosaic.version = 11 : i64} {
  func.func @_copy_kernel(%arg0: memref<128x16xf32, #tpu.memory_space<vmem>>, %arg1: memref<128x16xf32, #tpu.memory_space<vmem>>) attributes {dimension_semantics = [], scalar_prefetch = 0 : i64, scratch_operands = 0 : i64, tpu.core_type = #tpu.core_type<tc>} {
    %c0 = arith.constant 0 : index
    %c0_0 = arith.constant 0 : index
    %0 = vector.load %arg0[%c0, %c0_0] : memref<128x16xf32, #tpu.memory_space<vmem>>, vector<128x16xf32>
    %c0_1 = arith.constant 0 : index
    %c0_2 = arith.constant 0 : index
    %1 = vector.load %arg1[%c0_1, %c0_2] : memref<128x16xf32, #tpu.memory_space<vmem>>, vector<128x16xf32>
    tpu.vector_store %arg1[%c0_1, %c0_2], %0 {strides = array<i32>} : memref<128x16xf32, #tpu.memory_space<vmem>>, vector<128x16xf32>,
    return
  }
}

</mosaic_0001>

<llo_original>
// kernel: _lambda_.1
$region0: #{_lambda_.1}
  #allocation0 [shape = 'u32[]', space=smem, size = 0x4, offset = 0x4, fixed_abs, tag = 'smem constant byte address 0x4 - core index']
  #allocation1 [shape = 'u32[144,128]{1,0:T(1,128)}', space=vmem, size = 0x12000, scoped, tag = 'internal scratch']
  %s0 = inlined_call_operand.hbm [shape: f32[128,16], index: 0, kind: input, shape index: {}]
  %s1 = inlined_call_operand.hbm [shape: f32[128,16], index: 1, kind: output, shape index: {}]
  %s2 = sld [smem:[#allocation0]]
  $region18: #{_lambda_.1} parent=0
    _
  %s4 = ssub.s32 1, %s2
  %s5 = scalar_select 0, %s4, %s2
  $region1: #{_lambda_.1} parent=0
    #allocation2 [shape = 'u8[65536]{0}', space=vmem, size = 0x10000, scoped, tag = 'input window, operand 0, single buffered']
    #allocation3 [shape = 's32[1]{0}', space=sflag, size = 0x4, scoped, tag = 'scoped memory for _lambda_.1']
    #allocation4 [shape = 's32[1]{0}', space=sflag, size = 0x4, scoped, tag = 'scoped memory for _lambda_.1']
    #allocation5 [shape = 'u8[65536]{0}', space=vmem, size = 0x10000, scoped, tag = 'output window, operand 0, single buffered']
    %6 = vsyncpa [#allocation3], 0
    %7 = vsyncpa [#allocation4], 0
    // Predicated region
    $region2: #{_lambda_.1} parent=1 // pred_check
      _
    $region3: #{_lambda_.1} parent=1 // pred_check_branch
      %9 = sbr.rel (0) target = $region5
    $region4: #{_lambda_.1} parent=1 // pred_region
      %s11 = ssub.s32 2048, 2048
      %12 = vsyncadd [#allocation3], %s11
      %s13 = sshll.u32 [#allocation2], 4
      %s14 = int_to_ptr.vmem [resolvable:$true] %s13
      %19 = dma.hbm_to_vmem [thread:$0]  %s0, 2048, %s14, [#allocation3], 128, 128, 8
    $region5: #{_lambda_.1} parent=1 // pred_fallthru
      _
    // Predicated region
    $region6: #{_lambda_.1} parent=1 // pred_check
      _
    $region7: #{_lambda_.1} parent=1 // pred_check_branch
      %21 = sbr.rel (0) target = $region9
    $region8: #{_lambda_.1} parent=1 // pred_region
      %22 = dma.done [#allocation3], 2048
    $region9: #{_lambda_.1} parent=1 // pred_fallthru
      _
    %v23 = vld [vmem:[#allocation2] sm:$0xff]
    %v24 = vld [vmem:[#allocation2 + $0x8] sm:$0xff]
    %v25 = vld [vmem:[#allocation2 + $0x10] sm:$0xff]
    %v26 = vld [vmem:[#allocation2 + $0x18] sm:$0xff]
    %v27 = vld [vmem:[#allocation2 + $0x20] sm:$0xff]
    %v28 = vld [vmem:[#allocation2 + $0x28] sm:$0xff]
    %v29 = vld [vmem:[#allocation2 + $0x30] sm:$0xff]
    %v30 = vld [vmem:[#allocation2 + $0x38] sm:$0xff]
    %v31 = vld [vmem:[#allocation2 + $0x40] sm:$0xff]
    %v32 = vld [vmem:[#allocation2 + $0x48] sm:$0xff]
    %v33 = vld [vmem:[#allocation2 + $0x50] sm:$0xff]
    %v34 = vld [vmem:[#allocation2 + $0x58] sm:$0xff]
    %v35 = vld [vmem:[#allocation2 + $0x60] sm:$0xff]
    %v36 = vld [vmem:[#allocation2 + $0x68] sm:$0xff]
    %v37 = vld [vmem:[#allocation2 + $0x70] sm:$0xff]
    %v38 = vld [vmem:[#allocation2 + $0x78] sm:$0xff]
    %vm39 = vcmask 130048
    %40 = vst.msk [vmem:[#allocation5] sm:$0xff] %vm39, %v23
    %41 = vst.msk [vmem:[#allocation5 + $0x8] sm:$0xff] %vm39, %v24
    %42 = vst.msk [vmem:[#allocation5 + $0x10] sm:$0xff] %vm39, %v25
    %43 = vst.msk [vmem:[#allocation5 + $0x18] sm:$0xff] %vm39, %v26
    %44 = vst.msk [vmem:[#allocation5 + $0x20] sm:$0xff] %vm39, %v27
    %45 = vst.msk [vmem:[#allocation5 + $0x28] sm:$0xff] %vm39, %v28
    %46 = vst.msk [vmem:[#allocation5 + $0x30] sm:$0xff] %vm39, %v29
    %47 = vst.msk [vmem:[#allocation5 + $0x38] sm:$0xff] %vm39, %v30
    %48 = vst.msk [vmem:[#allocation5 + $0x40] sm:$0xff] %vm39, %v31
    %49 = vst.msk [vmem:[#allocation5 + $0x48] sm:$0xff] %vm39, %v32
    %50 = vst.msk [vmem:[#allocation5 + $0x50] sm:$0xff] %vm39, %v33
    %51 = vst.msk [vmem:[#allocation5 + $0x58] sm:$0xff] %vm39, %v34
    %52 = vst.msk [vmem:[#allocation5 + $0x60] sm:$0xff] %vm39, %v35
    %53 = vst.msk [vmem:[#allocation5 + $0x68] sm:$0xff] %vm39, %v36
    %54 = vst.msk [vmem:[#allocation5 + $0x70] sm:$0xff] %vm39, %v37
    %55 = vst.msk [vmem:[#allocation5 + $0x78] sm:$0xff] %vm39, %v38
    // Predicated region
    $region10: #{_lambda_.1} parent=1 // pred_check
      _
    $region11: #{_lambda_.1} parent=1 // pred_check_branch
      %57 = sbr.rel (0) target = $region13
    $region12: #{_lambda_.1} parent=1 // pred_region
      %s59 = ssub.s32 2048, 2048
      %60 = vsyncadd [#allocation4], %s59
      %s61 = sshll.u32 [#allocation5], 4
      %s62 = int_to_ptr.vmem [resolvable:$true] %s61
      %67 = dma.vmem_to_hbm [thread:$0]  %s62, 2048, %s1, [#allocation4], 128, 128, 8
    $region13: #{_lambda_.1} parent=1 // pred_fallthru
      _
    // Predicated region
    $region14: #{_lambda_.1} parent=1 // pred_check
      _
    $region15: #{_lambda_.1} parent=1 // pred_check_branch
      %69 = sbr.rel (0) target = $region17
    $region16: #{_lambda_.1} parent=1 // pred_region
      %70 = dma.done [#allocation4], 2048
    $region17: #{_lambda_.1} parent=1 // pred_fallthru
      _
    %71 = vsyncpa [#allocation3], 1
    %72 = vsyncpa [#allocation4], 1

</llo_original>
